<compile_context>
chip_gen: v7x
topology: tpu7x:2x2x1
jax: 0.10.0
libtpu: 0.0.40
codegen_flags: <defaults>
</compile_context>

<pallas_src>
import functools

import jax
import jax.numpy as jnp
from jax.experimental import pallas as pl
from jax.experimental.pallas import tpu as pltpu


def _layer_norm(a, gamma, beta, eps=1e-5):
    mu = jnp.mean(a, axis=-1, keepdims=True)
    var = jnp.mean((a - mu) ** 2, axis=-1, keepdims=True)
    return (a - mu) * jax.lax.rsqrt(var + eps) * gamma + beta


def encoder_layer_kernel(x_ref, wqkv_ref, w1_ref, b1_ref, w2_ref, b2_ref,
                         g1_ref, be1_ref, g2_ref, be2_ref, out_ref,
                         *, nheads, head_dim):
    bt, S, E = x_ref.shape
    rows = bt * S

    x2 = x_ref[...].astype(jnp.float32).reshape(rows, E)   # (rows, E) f32
    xb = x2.astype(jnp.bfloat16)                            # bf16 once

    # --- fused Q/K/V projection: one (rows, E) x (E, 3E) MXU matmul; the
    #     1/sqrt(head_dim) scale is already folded into the W_Q columns.
    qkv = jnp.dot(xb, wqkv_ref[...],
                  preferred_element_type=jnp.float32).astype(jnp.bfloat16)

    # --- fold heads into the einsum batch dim -> (nheads*bt, S, head_dim).
    #     Static lane slices + a major-axis concat (no 4-D transpose needed).
    def to_heads(off):
        return jnp.concatenate(
            [qkv[:, off + h * head_dim: off + (h + 1) * head_dim]
                 .reshape(bt, S, head_dim) for h in range(nheads)],
            axis=0)

    qh = to_heads(0)
    kh = to_heads(E)
    vh = to_heads(2 * E)

    # --- ONE batched score matmul + softmax + ONE batched PV matmul.
    s = jnp.einsum("bqd,bkd->bqk", qh, kh,
                   preferred_element_type=jnp.float32)      # (nheads*bt, S, S)
    s = s - jnp.max(s, axis=-1, keepdims=True)
    e = jnp.exp(s)
    p = e / jnp.sum(e, axis=-1, keepdims=True)              # exact softmax
    zh = jnp.einsum("bqk,bkd->bqd", p.astype(jnp.bfloat16), vh,
                    preferred_element_type=jnp.float32)     # (nheads*bt, S, hd)

    # --- unfold heads back onto the embedding lanes: single lane-axis concat.
    z = jnp.concatenate(
        [zh[h * bt:(h + 1) * bt].reshape(rows, head_dim) for h in range(nheads)],
        axis=-1)                                            # (rows, E) f32

    # --- residual + LayerNorm (self-attention).
    xn = _layer_norm(x2 + z, g1_ref[0], be1_ref[0])

    # --- feed-forward: relu(xn @ W1 + b1) @ W2 + b2 (bf16 operands, f32 acc).
    h1 = jnp.dot(xn.astype(jnp.bfloat16), w1_ref[...],
                 preferred_element_type=jnp.float32) + b1_ref[0]
    h1 = jnp.maximum(h1, 0.0)
    h2 = jnp.dot(h1.astype(jnp.bfloat16), w2_ref[...],
                 preferred_element_type=jnp.float32) + b2_ref[0]

    # --- residual + LayerNorm (ff).
    out = _layer_norm(xn + h2, g2_ref[0], be2_ref[0])
    out_ref[...] = out.reshape(bt, S, E).astype(out_ref.dtype)


def _block_diag(w):
    """(nheads, hd, hd) per-head weights -> block-diagonal (E, E) matrix."""
    nheads, hd, _ = w.shape
    E = nheads * hd
    m = jnp.zeros((E, E), w.dtype)
    for h in range(nheads):
        m = m.at[h * hd:(h + 1) * hd, h * hd:(h + 1) * hd].set(w[h])
    return m


def _vmem_limit_bytes():
    """Generation-aware VMEM budget: ~96 MiB on v5e/v6e (128 MiB physical),
    48 MiB on v7x (64 MiB physical)."""
    try:
        cap = pltpu.get_tpu_info().vmem_capacity_bytes
    except Exception:           # fall back to the smallest (v7x-safe) budget
        cap = 64 * 1024 * 1024
    return int(min(100 * 1024 * 1024, cap * 3 // 4))


def _block_vmem_bytes(bt, S, E, ff_dim, nheads):
    """Rough per-grid-step VMEM estimate: double-buffered I/O + weights plus
    the main in-kernel intermediates, with a 2x fudge for compiler temps."""
    rows = bt * S
    io = 2 * rows * E * 4 * 2                               # x + out blocks
    w = (3 * E * E + 2 * E * ff_dim) * 2 * 2                # bf16 weights (x2 buf)
    act = rows * (3 * E * 2          # qkv bf16
                  + 3 * E * 2        # head-major q/k/v copies bf16
                  + 3 * E * 4        # z / xn / residual temps f32
                  + ff_dim * 4)      # h1 f32
    act += 3 * nheads * bt * S * S * 4                      # scores / exp / p
    return io + w + 2 * act


def _pick_batch_tile(B, S, E, ff_dim, nheads, vmem_budget, target_rows=512):
    """Largest batch tile that (a) leaves >= 2 grid steps (v7x has 2 TCs),
    (b) fits the VMEM budget, (c) stops growing once bt*S rows are enough to
    fill the MXU and amortize the ~0.35us per-grid-step overhead."""
    best = 1
    for bt in range(1, B + 1):
        if B % bt:
            continue
        if B >= 2 and B // bt < 2:
            continue
        if _block_vmem_bytes(bt, S, E, ff_dim, nheads) > vmem_budget:
            break
        best = bt
        if bt * S >= target_rows:
            break
    return best


def transformer_encoder_layer(x, params):
    """x: (B, S, E) float32 -> (B, S, E) float32."""
    B, S, E = x.shape
    (wq, wk, wv, w1, b1, w2, b2, g1, be1, g2, be2) = params
    nheads, hd, _ = wq.shape
    ff_dim = w1.shape[1]
    scale = 1.0 / (hd ** 0.5)

    # Wrapper-side packing: block-diagonal per-head weights fused into a single
    # (E, 3E) bf16 QKV weight; the softmax scale is folded into W_Q (f32, then
    # cast).  Biases / LayerNorm params stay f32.
    # TODO(synk): block-diag packing only while E <= one MXU tile (128 v5e,
    #             256 v6e/v7x); beyond that use a head-batched projection.
    wqkv = jnp.concatenate(
        [_block_diag(wq) * scale, _block_diag(wk), _block_diag(wv)],
        axis=1).astype(jnp.bfloat16)

    weights = (wqkv, w1.astype(jnp.bfloat16), b1, w2.astype(jnp.bfloat16), b2,
               g1, be1, g2, be2)

    vmem_limit = _vmem_limit_bytes()
    bt = _pick_batch_tile(B, S, E, ff_dim, nheads, vmem_limit)
    grid = (B // bt,)

    def full_spec(arr):
        n = arr.ndim
        return pl.BlockSpec(arr.shape, lambda i: (0,) * n)   # resident params

    in_specs = [pl.BlockSpec((bt, S, E), lambda i: (i, 0, 0))] + \
               [full_spec(p) for p in weights]

    kernel = functools.partial(encoder_layer_kernel, nheads=nheads, head_dim=hd)

    return pl.pallas_call(
        kernel,
        out_shape=jax.ShapeDtypeStruct((B, S, E), jnp.float32),
        grid_spec=pltpu.PrefetchScalarGridSpec(
            num_scalar_prefetch=0,
            grid=grid,
            in_specs=in_specs,
            out_specs=pl.BlockSpec((bt, S, E), lambda i: (i, 0, 0)),
        ),
        compiler_params=pltpu.CompilerParams(
            dimension_semantics=("parallel",),
            vmem_limit_bytes=vmem_limit,
        ),
    )(x, *weights)


def reference_forward(x, params):
    """Pure-JAX reference mirroring the kernel's numerics (bf16 matmul
    operands, f32 accumulation, scale folded into W_Q before the bf16 cast,
    exact softmax) for tight verification of the module semantics."""
    (wq, wk, wv, w1, b1, w2, b2, g1, be1, g2, be2) = params
    nheads, hd, _ = wq.shape
    scale = 1.0 / (hd ** 0.5)
    xb = x.astype(jnp.bfloat16)
    outs = []
    for h in range(nheads):
        xh = xb[:, :, h * hd:(h + 1) * hd]
        q = jnp.einsum("bsd,de->bse", xh, (wq[h] * scale).astype(jnp.bfloat16),
                       preferred_element_type=jnp.float32)
        k = jnp.einsum("bsd,de->bse", xh, wk[h].astype(jnp.bfloat16),
                       preferred_element_type=jnp.float32)
        v = jnp.einsum("bsd,de->bse", xh, wv[h].astype(jnp.bfloat16),
                       preferred_element_type=jnp.float32)
        s = jnp.einsum("bqd,bkd->bqk", q.astype(jnp.bfloat16),
                       k.astype(jnp.bfloat16),
                       preferred_element_type=jnp.float32)
        p = jax.nn.softmax(s, axis=-1)
        outs.append(jnp.einsum("bqk,bkd->bqd", p.astype(jnp.bfloat16),
                               v.astype(jnp.bfloat16),
                               preferred_element_type=jnp.float32))
    z = jnp.concatenate(outs, axis=-1)
    xn = _layer_norm(x + z, g1[0], be1[0])
    ff1 = jnp.dot(xn.astype(jnp.bfloat16), w1.astype(jnp.bfloat16),
                  preferred_element_type=jnp.float32) + b1[0]
    ff1 = jnp.maximum(ff1, 0.0)
    ff2 = jnp.dot(ff1.astype(jnp.bfloat16), w2.astype(jnp.bfloat16),
                  preferred_element_type=jnp.float32) + b2[0]
    return _layer_norm(xn + ff2, g2[0], be2[0])


if __name__ == "__main__":
    B, S, E = 2, 8, 32
    NHEADS, FF_DIM = 4, 64
    HD = E // NHEADS

    key = jax.random.PRNGKey(0)
    ks = jax.random.split(key, 8)

    wq = jax.random.normal(ks[0], (NHEADS, HD, HD), jnp.float32)
    wk = jax.random.normal(ks[1], (NHEADS, HD, HD), jnp.float32)
    wv = jax.random.normal(ks[2], (NHEADS, HD, HD), jnp.float32)
    w1 = jax.random.normal(ks[3], (E, FF_DIM), jnp.float32) * 0.1
    b1 = jax.random.normal(ks[4], (1, FF_DIM), jnp.float32) * 0.1
    w2 = jax.random.normal(ks[5], (FF_DIM, E), jnp.float32) * 0.1
    b2 = jax.random.normal(ks[6], (1, E), jnp.float32) * 0.1
    g1 = jnp.ones((1, E), jnp.float32)
    be1 = jnp.zeros((1, E), jnp.float32)
    g2 = jnp.ones((1, E), jnp.float32)
    be2 = jnp.zeros((1, E), jnp.float32)
    params = (wq, wk, wv, w1, b1, w2, b2, g1, be1, g2, be2)

    x = jax.random.normal(ks[7], (B, S, E), jnp.float32)

    out = transformer_encoder_layer(x, params)
    out = jax.block_until_ready(out)

    ref = reference_forward(x, params)
    assert out.shape == (B, S, E)
    assert jnp.allclose(out, ref, atol=2e-2, rtol=2e-2), "mismatch vs. reference"
    print("KERNEL_OK")
</pallas_src>

<mosaic_0001>
module attributes {stable_mosaic.version = 11 : i64} {
  func.func @encoder_layer_kernel(%arg0: i32, %arg1: memref<1x8x32xf32, #tpu.memory_space<vmem>>, %arg2: memref<32x96xbf16, #tpu.memory_space<vmem>>, %arg3: memref<32x64xbf16, #tpu.memory_space<vmem>>, %arg4: memref<1x64xf32, #tpu.memory_space<vmem>>, %arg5: memref<64x32xbf16, #tpu.memory_space<vmem>>, %arg6: memref<1x32xf32, #tpu.memory_space<vmem>>, %arg7: memref<1x32xf32, #tpu.memory_space<vmem>>, %arg8: memref<1x32xf32, #tpu.memory_space<vmem>>, %arg9: memref<1x32xf32, #tpu.memory_space<vmem>>, %arg10: memref<1x32xf32, #tpu.memory_space<vmem>>, %arg11: memref<1x8x32xf32, #tpu.memory_space<vmem>>) attributes {dimension_semantics = [#tpu.dimension_semantics<parallel>], iteration_bounds = array<i64: 2>, scalar_prefetch = 0 : i64, scratch_operands = 0 : i64, tpu.core_type = #tpu.core_type<tc>, window_params = [{transform_indices = @transform_0, window_bounds = array<i64: 1, 8, 32>}, {pipeline_mode = #tpu.pipeline_mode<synchronous>, transform_indices = @transform_1, window_bounds = array<i64: 32, 96>}, {pipeline_mode = #tpu.pipeline_mode<synchronous>, transform_indices = @transform_2, window_bounds = array<i64: 32, 64>}, {pipeline_mode = #tpu.pipeline_mode<synchronous>, transform_indices = @transform_3, window_bounds = array<i64: 1, 64>}, {pipeline_mode = #tpu.pipeline_mode<synchronous>, transform_indices = @transform_4, window_bounds = array<i64: 64, 32>}, {pipeline_mode = #tpu.pipeline_mode<synchronous>, transform_indices = @transform_5, window_bounds = array<i64: 1, 32>}, {pipeline_mode = #tpu.pipeline_mode<synchronous>, transform_indices = @transform_6, window_bounds = array<i64: 1, 32>}, {pipeline_mode = #tpu.pipeline_mode<synchronous>, transform_indices = @transform_7, window_bounds = array<i64: 1, 32>}, {pipeline_mode = #tpu.pipeline_mode<synchronous>, transform_indices = @transform_8, window_bounds = array<i64: 1, 32>}, {pipeline_mode = #tpu.pipeline_mode<synchronous>, transform_indices = @transform_9, window_bounds = array<i64: 1, 32>}, {transform_indices = @transform_10, window_bounds = array<i64: 1, 8, 32>}]} {
    %c0 = arith.constant 0 : index
    %c0_0 = arith.constant 0 : index
    %c0_1 = arith.constant 0 : index
    %0 = vector.load %arg1[%c0, %c0_0, %c0_1] : memref<1x8x32xf32, #tpu.memory_space<vmem>>, vector<1x8x32xf32>
    %1 = vector.shape_cast %0 : vector<1x8x32xf32> to vector<8x32xf32>
    %2 = arith.truncf %1 : vector<8x32xf32> to vector<8x32xbf16>
    %c0_2 = arith.constant 0 : index
    %c0_3 = arith.constant 0 : index
    %3 = vector.load %arg2[%c0_2, %c0_3] : memref<32x96xbf16, #tpu.memory_space<vmem>>, vector<32x96xbf16>
    %cst = arith.constant dense<0.000000e+00> : vector<8x96xf32>
    %4 = tpu.matmul %2, %3, %cst {dimension_numbers = #tpu.dot_dimension_numbers<[1], [0], [0], [1], [0, 0, 1, 1], [], []>} : vector<8x32xbf16>, vector<32x96xbf16>, vector<8x96xf32> -> vector<8x96xf32>
    %5 = arith.truncf %4 : vector<8x96xf32> to vector<8x96xbf16>
    %6 = vector.extract_strided_slice %5 {offsets = [0, 0], sizes = [8, 8], strides = [1, 1]} : vector<8x96xbf16> to vector<8x8xbf16>
    %7 = vector.shape_cast %6 : vector<8x8xbf16> to vector<1x8x8xbf16>
    %8 = vector.extract_strided_slice %5 {offsets = [0, 8], sizes = [8, 8], strides = [1, 1]} : vector<8x96xbf16> to vector<8x8xbf16>
    %9 = vector.shape_cast %8 : vector<8x8xbf16> to vector<1x8x8xbf16>
    %10 = vector.extract_strided_slice %5 {offsets = [0, 16], sizes = [8, 8], strides = [1, 1]} : vector<8x96xbf16> to vector<8x8xbf16>
    %11 = vector.shape_cast %10 : vector<8x8xbf16> to vector<1x8x8xbf16>
    %12 = vector.extract_strided_slice %5 {offsets = [0, 24], sizes = [8, 8], strides = [1, 1]} : vector<8x96xbf16> to vector<8x8xbf16>
    %13 = vector.shape_cast %12 : vector<8x8xbf16> to vector<1x8x8xbf16>
    %14 = tpu.concatenate %7, %9, %11, %13 in 0 : vector<1x8x8xbf16>, vector<1x8x8xbf16>, vector<1x8x8xbf16>, vector<1x8x8xbf16> -> vector<4x8x8xbf16>
    %15 = vector.extract_strided_slice %5 {offsets = [0, 32], sizes = [8, 8], strides = [1, 1]} : vector<8x96xbf16> to vector<8x8xbf16>
    %16 = vector.shape_cast %15 : vector<8x8xbf16> to vector<1x8x8xbf16>
    %17 = vector.extract_strided_slice %5 {offsets = [0, 40], sizes = [8, 8], strides = [1, 1]} : vector<8x96xbf16> to vector<8x8xbf16>
    %18 = vector.shape_cast %17 : vector<8x8xbf16> to vector<1x8x8xbf16>
    %19 = vector.extract_strided_slice %5 {offsets = [0, 48], sizes = [8, 8], strides = [1, 1]} : vector<8x96xbf16> to vector<8x8xbf16>
    %20 = vector.shape_cast %19 : vector<8x8xbf16> to vector<1x8x8xbf16>
    %21 = vector.extract_strided_slice %5 {offsets = [0, 56], sizes = [8, 8], strides = [1, 1]} : vector<8x96xbf16> to vector<8x8xbf16>
    %22 = vector.shape_cast %21 : vector<8x8xbf16> to vector<1x8x8xbf16>
    %23 = tpu.concatenate %16, %18, %20, %22 in 0 : vector<1x8x8xbf16>, vector<1x8x8xbf16>, vector<1x8x8xbf16>, vector<1x8x8xbf16> -> vector<4x8x8xbf16>
    %24 = vector.extract_strided_slice %5 {offsets = [0, 64], sizes = [8, 8], strides = [1, 1]} : vector<8x96xbf16> to vector<8x8xbf16>
    %25 = vector.shape_cast %24 : vector<8x8xbf16> to vector<1x8x8xbf16>
    %26 = vector.extract_strided_slice %5 {offsets = [0, 72], sizes = [8, 8], strides = [1, 1]} : vector<8x96xbf16> to vector<8x8xbf16>
    %27 = vector.shape_cast %26 : vector<8x8xbf16> to vector<1x8x8xbf16>
    %28 = vector.extract_strided_slice %5 {offsets = [0, 80], sizes = [8, 8], strides = [1, 1]} : vector<8x96xbf16> to vector<8x8xbf16>
    %29 = vector.shape_cast %28 : vector<8x8xbf16> to vector<1x8x8xbf16>
    %30 = vector.extract_strided_slice %5 {offsets = [0, 88], sizes = [8, 8], strides = [1, 1]} : vector<8x96xbf16> to vector<8x8xbf16>
    %31 = vector.shape_cast %30 : vector<8x8xbf16> to vector<1x8x8xbf16>
    %32 = tpu.concatenate %25, %27, %29, %31 in 0 : vector<1x8x8xbf16>, vector<1x8x8xbf16>, vector<1x8x8xbf16>, vector<1x8x8xbf16> -> vector<4x8x8xbf16>
    "tpu.trace_start"() <{level = 10 : i32, message = "bqd,bkd->bqk"}> : () -> ()
    %cst_4 = arith.constant dense<0.000000e+00> : vector<4x8x8xf32>
    %33 = tpu.matmul %14, %23, %cst_4 {dimension_numbers = #tpu.dot_dimension_numbers<[2], [2], [1], [1], [0, 0, 0, 1, 1, 1], [0], [0]>} : vector<4x8x8xbf16>, vector<4x8x8xbf16>, vector<4x8x8xf32> -> vector<4x8x8xf32>
    "tpu.trace_stop"() : () -> ()
    %cst_5 = arith.constant dense<0xFF800000> : vector<4x8xf32>
    %34 = vector.multi_reduction <maximumf>, %33, %cst_5 [2] : vector<4x8x8xf32> to vector<4x8xf32>
    %35 = vector.shape_cast %34 : vector<4x8xf32> to vector<4x8x1xf32>
    %36 = vector.broadcast %35 : vector<4x8x1xf32> to vector<4x8x8xf32>
    %37 = arith.subf %33, %36 : vector<4x8x8xf32>
    %38 = math.exp %37 : vector<4x8x8xf32>
    %cst_6 = arith.constant dense<0.000000e+00> : vector<4x8xf32>
    %39 = vector.multi_reduction <add>, %38, %cst_6 [2] : vector<4x8x8xf32> to vector<4x8xf32>
    %40 = vector.shape_cast %39 : vector<4x8xf32> to vector<4x8x1xf32>
    %41 = vector.broadcast %40 : vector<4x8x1xf32> to vector<4x8x8xf32>
    %42 = arith.divf %38, %41 : vector<4x8x8xf32>
    %43 = arith.truncf %42 : vector<4x8x8xf32> to vector<4x8x8xbf16>
    "tpu.trace_start"() <{level = 10 : i32, message = "bqk,bkd->bqd"}> : () -> ()
    %cst_7 = arith.constant dense<0.000000e+00> : vector<4x8x8xf32>
    %44 = tpu.matmul %43, %32, %cst_7 {dimension_numbers = #tpu.dot_dimension_numbers<[2], [1], [1], [2], [0, 0, 0, 1, 1, 2], [0], [0]>} : vector<4x8x8xbf16>, vector<4x8x8xbf16>, vector<4x8x8xf32> -> vector<4x8x8xf32>
    "tpu.trace_stop"() : () -> ()
    %45 = vector.extract_strided_slice %44 {offsets = [0, 0, 0], sizes = [1, 8, 8], strides = [1, 1, 1]} : vector<4x8x8xf32> to vector<1x8x8xf32>
    %46 = vector.shape_cast %45 : vector<1x8x8xf32> to vector<8x8xf32>
    %47 = vector.extract_strided_slice %44 {offsets = [1, 0, 0], sizes = [1, 8, 8], strides = [1, 1, 1]} : vector<4x8x8xf32> to vector<1x8x8xf32>
    %48 = vector.shape_cast %47 : vector<1x8x8xf32> to vector<8x8xf32>
    %49 = vector.extract_strided_slice %44 {offsets = [2, 0, 0], sizes = [1, 8, 8], strides = [1, 1, 1]} : vector<4x8x8xf32> to vector<1x8x8xf32>
    %50 = vector.shape_cast %49 : vector<1x8x8xf32> to vector<8x8xf32>
    %51 = vector.extract_strided_slice %44 {offsets = [3, 0, 0], sizes = [1, 8, 8], strides = [1, 1, 1]} : vector<4x8x8xf32> to vector<1x8x8xf32>
    %52 = vector.shape_cast %51 : vector<1x8x8xf32> to vector<8x8xf32>
    %53 = tpu.concatenate %46, %48, %50, %52 in 1 : vector<8x8xf32>, vector<8x8xf32>, vector<8x8xf32>, vector<8x8xf32> -> vector<8x32xf32>
    %54 = arith.addf %1, %53 : vector<8x32xf32>
    %c0_8 = arith.constant 0 : index
    %c0_9 = arith.constant 0 : index
    %55 = vector.load %arg7[%c0_8, %c0_9] : memref<1x32xf32, #tpu.memory_space<vmem>>, vector<1x32xf32>
    %56 = vector.shape_cast %55 : vector<1x32xf32> to vector<32xf32>
    %c0_10 = arith.constant 0 : index
    %c0_11 = arith.constant 0 : index
    %57 = vector.load %arg8[%c0_10, %c0_11] : memref<1x32xf32, #tpu.memory_space<vmem>>, vector<1x32xf32>
    %58 = vector.shape_cast %57 : vector<1x32xf32> to vector<32xf32>
    %cst_12 = arith.constant dense<0.000000e+00> : vector<8xf32>
    %59 = vector.multi_reduction <add>, %54, %cst_12 [1] : vector<8x32xf32> to vector<8xf32>
    %60 = vector.shape_cast %59 : vector<8xf32> to vector<8x1xf32>
    %cst_13 = arith.constant 3.200000e+01 : f32
    %61 = vector.broadcast %cst_13 : f32 to vector<8x1xf32>
    %62 = arith.divf %60, %61 : vector<8x1xf32>
    %63 = vector.broadcast %62 : vector<8x1xf32> to vector<8x32xf32>
    %64 = arith.subf %54, %63 : vector<8x32xf32>
    %65 = arith.mulf %64, %64 : vector<8x32xf32>
    %cst_14 = arith.constant dense<0.000000e+00> : vector<8xf32>
    %66 = vector.multi_reduction <add>, %65, %cst_14 [1] : vector<8x32xf32> to vector<8xf32>
    %67 = vector.shape_cast %66 : vector<8xf32> to vector<8x1xf32>
    %cst_15 = arith.constant 3.200000e+01 : f32
    %68 = vector.broadcast %cst_15 : f32 to vector<8x1xf32>
    %69 = arith.divf %67, %68 : vector<8x1xf32>
    %70 = vector.broadcast %62 : vector<8x1xf32> to vector<8x32xf32>
    %71 = arith.subf %54, %70 : vector<8x32xf32>
    %cst_16 = arith.constant 9.99999974E-6 : f32
    %72 = vector.broadcast %cst_16 : f32 to vector<8x1xf32>
    %73 = arith.addf %69, %72 : vector<8x1xf32>
    %74 = math.rsqrt %73 : vector<8x1xf32>
    %75 = vector.broadcast %74 : vector<8x1xf32> to vector<8x32xf32>
    %76 = arith.mulf %71, %75 : vector<8x32xf32>
    %77 = vector.shape_cast %56 : vector<32xf32> to vector<1x32xf32>
    %78 = vector.broadcast %77 : vector<1x32xf32> to vector<8x32xf32>
    %79 = arith.mulf %76, %78 : vector<8x32xf32>
    %80 = vector.shape_cast %58 : vector<32xf32> to vector<1x32xf32>
    %81 = vector.broadcast %80 : vector<1x32xf32> to vector<8x32xf32>
    %82 = arith.addf %79, %81 : vector<8x32xf32>
    %83 = arith.truncf %82 : vector<8x32xf32> to vector<8x32xbf16>
    %c0_17 = arith.constant 0 : index
    %c0_18 = arith.constant 0 : index
    %84 = vector.load %arg3[%c0_17, %c0_18] : memref<32x64xbf16, #tpu.memory_space<vmem>>, vector<32x64xbf16>
    %cst_19 = arith.constant dense<0.000000e+00> : vector<8x64xf32>
    %85 = tpu.matmul %83, %84, %cst_19 {dimension_numbers = #tpu.dot_dimension_numbers<[1], [0], [0], [1], [0, 0, 1, 1], [], []>} : vector<8x32xbf16>, vector<32x64xbf16>, vector<8x64xf32> -> vector<8x64xf32>
    %c0_20 = arith.constant 0 : index
    %c0_21 = arith.constant 0 : index
    %86 = vector.load %arg4[%c0_20, %c0_21] : memref<1x64xf32, #tpu.memory_space<vmem>>, vector<1x64xf32>
    %87 = vector.shape_cast %86 : vector<1x64xf32> to vector<64xf32>
    %88 = vector.shape_cast %87 : vector<64xf32> to vector<1x64xf32>
    %89 = vector.broadcast %88 : vector<1x64xf32> to vector<8x64xf32>
    %90 = arith.addf %85, %89 : vector<8x64xf32>
    %cst_22 = arith.constant 0.000000e+00 : f32
    %91 = vector.broadcast %cst_22 : f32 to vector<8x64xf32>
    %92 = arith.maximumf %90, %91 : vector<8x64xf32>
    %93 = arith.truncf %92 : vector<8x64xf32> to vector<8x64xbf16>
    %c0_23 = arith.constant 0 : index
    %c0_24 = arith.constant 0 : index
    %94 = vector.load %arg5[%c0_23, %c0_24] : memref<64x32xbf16, #tpu.memory_space<vmem>>, vector<64x32xbf16>
    %cst_25 = arith.constant dense<0.000000e+00> : vector<8x32xf32>
    %95 = tpu.matmul %93, %94, %cst_25 {dimension_numbers = #tpu.dot_dimension_numbers<[1], [0], [0], [1], [0, 0, 1, 1], [], []>} : vector<8x64xbf16>, vector<64x32xbf16>, vector<8x32xf32> -> vector<8x32xf32>
    %c0_26 = arith.constant 0 : index
    %c0_27 = arith.constant 0 : index
    %96 = vector.load %arg6[%c0_26, %c0_27] : memref<1x32xf32, #tpu.memory_space<vmem>>, vector<1x32xf32>
    %97 = vector.shape_cast %96 : vector<1x32xf32> to vector<32xf32>
    %98 = vector.shape_cast %97 : vector<32xf32> to vector<1x32xf32>
    %99 = vector.broadcast %98 : vector<1x32xf32> to vector<8x32xf32>
    %100 = arith.addf %95, %99 : vector<8x32xf32>
    %101 = arith.addf %82, %100 : vector<8x32xf32>
    %c0_28 = arith.constant 0 : index
    %c0_29 = arith.constant 0 : index
    %102 = vector.load %arg9[%c0_28, %c0_29] : memref<1x32xf32, #tpu.memory_space<vmem>>, vector<1x32xf32>
    %103 = vector.shape_cast %102 : vector<1x32xf32> to vector<32xf32>
    %c0_30 = arith.constant 0 : index
    %c0_31 = arith.constant 0 : index
    %104 = vector.load %arg10[%c0_30, %c0_31] : memref<1x32xf32, #tpu.memory_space<vmem>>, vector<1x32xf32>
    %105 = vector.shape_cast %104 : vector<1x32xf32> to vector<32xf32>
    %cst_32 = arith.constant dense<0.000000e+00> : vector<8xf32>
    %106 = vector.multi_reduction <add>, %101, %cst_32 [1] : vector<8x32xf32> to vector<8xf32>
    %107 = vector.shape_cast %106 : vector<8xf32> to vector<8x1xf32>
    %cst_33 = arith.constant 3.200000e+01 : f32
    %108 = vector.broadcast %cst_33 : f32 to vector<8x1xf32>
    %109 = arith.divf %107, %108 : vector<8x1xf32>
    %110 = vector.broadcast %109 : vector<8x1xf32> to vector<8x32xf32>
    %111 = arith.subf %101, %110 : vector<8x32xf32>
    %112 = arith.mulf %111, %111 : vector<8x32xf32>
    %cst_34 = arith.constant dense<0.000000e+00> : vector<8xf32>
    %113 = vector.multi_reduction <add>, %112, %cst_34 [1] : vector<8x32xf32> to vector<8xf32>
    %114 = vector.shape_cast %113 : vector<8xf32> to vector<8x1xf32>
    %cst_35 = arith.constant 3.200000e+01 : f32
    %115 = vector.broadcast %cst_35 : f32 to vector<8x1xf32>
    %116 = arith.divf %114, %115 : vector<8x1xf32>
    %117 = vector.broadcast %109 : vector<8x1xf32> to vector<8x32xf32>
    %118 = arith.subf %101, %117 : vector<8x32xf32>
    %cst_36 = arith.constant 9.99999974E-6 : f32
    %119 = vector.broadcast %cst_36 : f32 to vector<8x1xf32>
    %120 = arith.addf %116, %119 : vector<8x1xf32>
    %121 = math.rsqrt %120 : vector<8x1xf32>
    %122 = vector.broadcast %121 : vector<8x1xf32> to vector<8x32xf32>
    %123 = arith.mulf %118, %122 : vector<8x32xf32>
    %124 = vector.shape_cast %103 : vector<32xf32> to vector<1x32xf32>
    %125 = vector.broadcast %124 : vector<1x32xf32> to vector<8x32xf32>
    %126 = arith.mulf %123, %125 : vector<8x32xf32>
    %127 = vector.shape_cast %105 : vector<32xf32> to vector<1x32xf32>
    %128 = vector.broadcast %127 : vector<1x32xf32> to vector<8x32xf32>
    %129 = arith.addf %126, %128 : vector<8x32xf32>
    %130 = vector.shape_cast %129 : vector<8x32xf32> to vector<1x8x32xf32>
    %c0_37 = arith.constant 0 : index
    %c0_38 = arith.constant 0 : index
    %c0_39 = arith.constant 0 : index
    %131 = vector.load %arg11[%c0_37, %c0_38, %c0_39] : memref<1x8x32xf32, #tpu.memory_space<vmem>>, vector<1x8x32xf32>
    tpu.vector_store %arg11[%c0_37, %c0_38, %c0_39], %130 {strides = array<i32>} : memref<1x8x32xf32, #tpu.memory_space<vmem>>, vector<1x8x32xf32>,
    return
  }
  func.func @transform_0(%arg0: i32) -> (i32, i32, i32) {
    %c0_i32 = arith.constant 0 : i32
    %c0_i32_0 = arith.constant 0 : i32
    %c0_i32_1 = arith.constant 0 : i32
    return %arg0, %c0_i32, %c0_i32_0 : i32, i32, i32
  }
  func.func @transform_1(%arg0: i32) -> (i32, i32) {
    %c0_i32 = arith.constant 0 : i32
    %c0_i32_0 = arith.constant 0 : i32
    %c0_i32_1 = arith.constant 0 : i32
    return %c0_i32, %c0_i32_0 : i32, i32
  }
  func.func @transform_2(%arg0: i32) -> (i32, i32) {
    %c0_i32 = arith.constant 0 : i32
    %c0_i32_0 = arith.constant 0 : i32
    %c0_i32_1 = arith.constant 0 : i32
    return %c0_i32, %c0_i32_0 : i32, i32
  }
  func.func @transform_3(%arg0: i32) -> (i32, i32) {
    %c0_i32 = arith.constant 0 : i32
    %c0_i32_0 = arith.constant 0 : i32
    %c0_i32_1 = arith.constant 0 : i32
    return %c0_i32, %c0_i32_0 : i32, i32
  }
  func.func @transform_4(%arg0: i32) -> (i32, i32) {
    %c0_i32 = arith.constant 0 : i32
    %c0_i32_0 = arith.constant 0 : i32
    %c0_i32_1 = arith.constant 0 : i32
    return %c0_i32, %c0_i32_0 : i32, i32
  }
  func.func @transform_5(%arg0: i32) -> (i32, i32) {
    %c0_i32 = arith.constant 0 : i32
    %c0_i32_0 = arith.constant 0 : i32
    %c0_i32_1 = arith.constant 0 : i32
    return %c0_i32, %c0_i32_0 : i32, i32
  }
  func.func @transform_6(%arg0: i32) -> (i32, i32) {
    %c0_i32 = arith.constant 0 : i32
    %c0_i32_0 = arith.constant 0 : i32
    %c0_i32_1 = arith.constant 0 : i32
    return %c0_i32, %c0_i32_0 : i32, i32
  }
  func.func @transform_7(%arg0: i32) -> (i32, i32) {
    %c0_i32 = arith.constant 0 : i32
    %c0_i32_0 = arith.constant 0 : i32
    %c0_i32_1 = arith.constant 0 : i32
    return %c0_i32, %c0_i32_0 : i32, i32
  }
  func.func @transform_8(%arg0: i32) -> (i32, i32) {
    %c0_i32 = arith.constant 0 : i32
    %c0_i32_0 = arith.constant 0 : i32
    %c0_i32_1 = arith.constant 0 : i32
    return %c0_i32, %c0_i32_0 : i32, i32
  }
  func.func @transform_9(%arg0: i32) -> (i32, i32) {
    %c0_i32 = arith.constant 0 : i32
    %c0_i32_0 = arith.constant 0 : i32
    %c0_i32_1 = arith.constant 0 : i32
    return %c0_i32, %c0_i32_0 : i32, i32
  }
  func.func @transform_10(%arg0: i32) -> (i32, i32, i32) {
    %c0_i32 = arith.constant 0 : i32
    %c0_i32_0 = arith.constant 0 : i32
    %c0_i32_1 = arith.constant 0 : i32
    return %arg0, %c0_i32, %c0_i32_0 : i32, i32, i32
  }
}

</mosaic_0001>

<llo_original>
// kernel: tpu_custom_call.1
$region0: #{tpu_custom_call.1}
  #allocation0 [shape = 'u32[]', space=smem, size = 0x4, offset = 0x4, fixed_abs, tag = 'smem constant byte address 0x4 - core index']
  #allocation1 [shape = 'u32[144,128]{1,0:T(1,128)}', space=vmem, size = 0x12000, scoped, tag = 'internal scratch']
  %s0 = inlined_call_operand.vmem [shape: f32[2,8,32], index: 0, kind: input, shape index: {}]
  %s1 = inlined_call_operand.vmem [shape: bf16[32,96], index: 1, kind: input, shape index: {}]
  %s2 = inlined_call_operand.vmem [shape: bf16[32,64], index: 2, kind: input, shape index: {}]
  %s3 = inlined_call_operand.vmem [shape: f32[1,64], index: 3, kind: input, shape index: {}]
  %s4 = inlined_call_operand.vmem [shape: bf16[64,32], index: 4, kind: input, shape index: {}]
  %s5 = inlined_call_operand.vmem [shape: f32[1,32], index: 5, kind: input, shape index: {}]
  %s6 = inlined_call_operand.vmem [shape: f32[1,32], index: 6, kind: input, shape index: {}]
  %s7 = inlined_call_operand.vmem [shape: f32[1,32], index: 7, kind: input, shape index: {}]
  %s8 = inlined_call_operand.vmem [shape: f32[1,32], index: 8, kind: input, shape index: {}]
  %s9 = inlined_call_operand.vmem [shape: f32[1,32], index: 9, kind: input, shape index: {}]
  %s10 = inlined_call_operand.hbm [shape: f32[2,8,32], index: 10, kind: output, shape index: {}]
  %s11 = sld [smem:[#allocation0]]
  $region73: #{tpu_custom_call.1} parent=0
    _
  %s13 = ssub.s32 1, %s11
  %s14 = scalar_select 0, %s13, %s11
  $region1: #{tpu_custom_call.1} parent=0
    #allocation2 [shape = 'u8[8192]{0}', space=vmem, size = 0x2000, scoped, tag = 'output window, operand 0']
    #allocation3 [shape = 's32[2]{0}', space=sflag, size = 0x8, scoped, tag = 'scoped memory for tpu_custom_call.1']
    %15 = vsyncpa [#allocation3], 0
    %s16 = scalar_lea.sflag [#allocation3], 1
    %17 = vsyncpa %s16, 0
    loop: start=0, step=1, limit=4
    $region2: #{tpu_custom_call.1} parent=1 // loop_pre_header
      _
    $region3: #{tpu_custom_call.1} parent=1 // loop_header
      %s19 = sphi 0, %s23
      %p20 = scmp.ge.s32.totalorder %s19, 4
      %s29 = sphi 0, %s31
      %s32 = sphi 0, %s29
      %s33 = sphi 0, %s32
      %s49 = sphi 0, %s33
      %s53 = sphi 0, %s53
      %s55 = sphi 0, %s53
      %s56 = sphi 0, %s55
      %s70 = sphi 0, %s56
      %s74 = sphi 0, %s74
      %s76 = sphi 0, %s74
      %s77 = sphi 0, %s76
      %s91 = sphi 0, %s77
      %s95 = sphi 0, %s95
      %s97 = sphi 0, %s95
      %s98 = sphi 0, %s97
      %s112 = sphi 0, %s98
      %s116 = sphi 0, %s116
      %s118 = sphi 0, %s116
      %s119 = sphi 0, %s118
      %s133 = sphi 0, %s119
      %s137 = sphi 0, %s137
      %s139 = sphi 0, %s137
      %s140 = sphi 0, %s139
      %s154 = sphi 0, %s140
      %s158 = sphi 0, %s158
      %s160 = sphi 0, %s158
      %s161 = sphi 0, %s160
      %s175 = sphi 0, %s161
      %s179 = sphi 0, %s179
      %s181 = sphi 0, %s179
      %s182 = sphi 0, %s181
      %s196 = sphi 0, %s182
      %s200 = sphi 0, %s200
      %s202 = sphi 0, %s200
      %s203 = sphi 0, %s202
      %s217 = sphi 0, %s203
      %s221 = sphi 0, %s221
      %s223 = sphi 0, %s221
      %s224 = sphi 0, %s223
      %s238 = sphi 0, %s224
      %s244 = sphi 0, %s246
      %s247 = sphi 0, %s244
      %s248 = sphi 0, %s247
      %s264 = sphi 0, %s248
    $region4: #{tpu_custom_call.1} parent=1 // loop_header_branch
      %22 = sbr.rel (%p20) target = $region8
    $region5: #{tpu_custom_call.1} parent=1 // loop_body
      %s24 = ssub.s32 %s19, 1
      %s25 = ssub.s32 %s19, 2
      %s26 = sadd.s32 %s19, 1
      %s27 = ssub.s32 %s19, %s26
      %p28 = scmp.eq.s32.totalorder %s27, 0
      %s30 = sadd.s32 %s29, 1
      %s31 = scalar_select %p28, %s29, %s30
      %p34 = pneg %p28
      %p35 = scmp.eq.s32.totalorder %s19, 1
      %p36 = por %p34, %p35
      %p37 = scmp.ne.s32.totalorder %s29, %s32
      %p38 = scmp.eq.s32.totalorder %s19, 0
      %p39 = por %p37, %p38
      %p40 = scmp.ne.s32.totalorder %s29, %s32
      %p41 = scmp.eq.s32.totalorder %s24, 1
      %p42 = por %p40, %p41
      %p43 = scmp.ne.s32.totalorder %s32, %s33
      %p44 = scmp.eq.s32.totalorder %s24, 0
      %p45 = por %p43, %p44
      %p46 = scmp.ne.s32.totalorder %s32, %s33
      %p47 = scmp.eq.s32.totalorder %s25, 1
      %p48 = por %p46, %p47
      %p50 = scmp.ne.s32.totalorder %s33, %s49
      %p51 = scmp.eq.s32.totalorder %s25, 0
      %p52 = por %p50, %p51
      %s54 = sadd.s32 %s53, 1
      %p57 = scmp.eq.s32.totalorder %s19, 1
      %p58 = scmp.ne.s32.totalorder %s53, %s55
      %p59 = scmp.eq.s32.totalorder %s19, 0
      %p60 = por %p58, %p59
      %p61 = scmp.ne.s32.totalorder %s53, %s55
      %p62 = scmp.eq.s32.totalorder %s24, 1
      %p63 = por %p61, %p62
      %p64 = scmp.ne.s32.totalorder %s55, %s56
      %p65 = scmp.eq.s32.totalorder %s24, 0
      %p66 = por %p64, %p65
      %p67 = scmp.ne.s32.totalorder %s55, %s56
      %p68 = scmp.eq.s32.totalorder %s25, 1
      %p69 = por %p67, %p68
      %p71 = scmp.ne.s32.totalorder %s56, %s70
      %p72 = scmp.eq.s32.totalorder %s25, 0
      %p73 = por %p71, %p72
      %s75 = sadd.s32 %s74, 1
      %p78 = scmp.eq.s32.totalorder %s19, 1
      %p79 = scmp.ne.s32.totalorder %s74, %s76
      %p80 = scmp.eq.s32.totalorder %s19, 0
      %p81 = por %p79, %p80
      %p82 = scmp.ne.s32.totalorder %s74, %s76
      %p83 = scmp.eq.s32.totalorder %s24, 1
      %p84 = por %p82, %p83
      %p85 = scmp.ne.s32.totalorder %s76, %s77
      %p86 = scmp.eq.s32.totalorder %s24, 0
      %p87 = por %p85, %p86
      %p88 = scmp.ne.s32.totalorder %s76, %s77
      %p89 = scmp.eq.s32.totalorder %s25, 1
      %p90 = por %p88, %p89
      %p92 = scmp.ne.s32.totalorder %s77, %s91
      %p93 = scmp.eq.s32.totalorder %s25, 0
      %p94 = por %p92, %p93
      %s96 = sadd.s32 %s95, 1
      %p99 = scmp.eq.s32.totalorder %s19, 1
      %p100 = scmp.ne.s32.totalorder %s95, %s97
      %p101 = scmp.eq.s32.totalorder %s19, 0
      %p102 = por %p100, %p101
      %p103 = scmp.ne.s32.totalorder %s95, %s97
      %p104 = scmp.eq.s32.totalorder %s24, 1
      %p105 = por %p103, %p104
      %p106 = scmp.ne.s32.totalorder %s97, %s98
      %p107 = scmp.eq.s32.totalorder %s24, 0
      %p108 = por %p106, %p107
      %p109 = scmp.ne.s32.totalorder %s97, %s98
      %p110 = scmp.eq.s32.totalorder %s25, 1
      %p111 = por %p109, %p110
      %p113 = scmp.ne.s32.totalorder %s98, %s112
      %p114 = scmp.eq.s32.totalorder %s25, 0
      %p115 = por %p113, %p114
      %s117 = sadd.s32 %s116, 1
      %p120 = scmp.eq.s32.totalorder %s19, 1
      %p121 = scmp.ne.s32.totalorder %s116, %s118
      %p122 = scmp.eq.s32.totalorder %s19, 0
      %p123 = por %p121, %p122
      %p124 = scmp.ne.s32.totalorder %s116, %s118
      %p125 = scmp.eq.s32.totalorder %s24, 1
      %p126 = por %p124, %p125
      %p127 = scmp.ne.s32.totalorder %s118, %s119
      %p128 = scmp.eq.s32.totalorder %s24, 0
      %p129 = por %p127, %p128
      %p130 = scmp.ne.s32.totalorder %s118, %s119
      %p131 = scmp.eq.s32.totalorder %s25, 1
      %p132 = por %p130, %p131
      %p134 = scmp.ne.s32.totalorder %s119, %s133
      %p135 = scmp.eq.s32.totalorder %s25, 0
      %p136 = por %p134, %p135
      %s138 = sadd.s32 %s137, 1
      %p141 = scmp.eq.s32.totalorder %s19, 1
      %p142 = scmp.ne.s32.totalorder %s137, %s139
      %p143 = scmp.eq.s32.totalorder %s19, 0
      %p144 = por %p142, %p143
      %p145 = scmp.ne.s32.totalorder %s137, %s139
      %p146 = scmp.eq.s32.totalorder %s24, 1
      %p147 = por %p145, %p146
      %p148 = scmp.ne.s32.totalorder %s139, %s140
      %p149 = scmp.eq.s32.totalorder %s24, 0
      %p150 = por %p148, %p149
      %p151 = scmp.ne.s32.totalorder %s139, %s140
      %p152 = scmp.eq.s32.totalorder %s25, 1
      %p153 = por %p151, %p152
      %p155 = scmp.ne.s32.totalorder %s140, %s154
      %p156 = scmp.eq.s32.totalorder %s25, 0
      %p157 = por %p155, %p156
      %s159 = sadd.s32 %s158, 1
      %p162 = scmp.eq.s32.totalorder %s19, 1
      %p163 = scmp.ne.s32.totalorder %s158, %s160
      %p164 = scmp.eq.s32.totalorder %s19, 0
      %p165 = por %p163, %p164
      %p166 = scmp.ne.s32.totalorder %s158, %s160
      %p167 = scmp.eq.s32.totalorder %s24, 1
      %p168 = por %p166, %p167
      %p169 = scmp.ne.s32.totalorder %s160, %s161
      %p170 = scmp.eq.s32.totalorder %s24, 0
      %p171 = por %p169, %p170
      %p172 = scmp.ne.s32.totalorder %s160, %s161
      %p173 = scmp.eq.s32.totalorder %s25, 1
      %p174 = por %p172, %p173
      %p176 = scmp.ne.s32.totalorder %s161, %s175
      %p177 = scmp.eq.s32.totalorder %s25, 0
      %p178 = por %p176, %p177
      %s180 = sadd.s32 %s179, 1
      %p183 = scmp.eq.s32.totalorder %s19, 1
      %p184 = scmp.ne.s32.totalorder %s179, %s181
      %p185 = scmp.eq.s32.totalorder %s19, 0
      %p186 = por %p184, %p185
      %p187 = scmp.ne.s32.totalorder %s179, %s181
      %p188 = scmp.eq.s32.totalorder %s24, 1
      %p189 = por %p187, %p188
      %p190 = scmp.ne.s32.totalorder %s181, %s182
      %p191 = scmp.eq.s32.totalorder %s24, 0
      %p192 = por %p190, %p191
      %p193 = scmp.ne.s32.totalorder %s181, %s182
      %p194 = scmp.eq.s32.totalorder %s25, 1
      %p195 = por %p193, %p194
      %p197 = scmp.ne.s32.totalorder %s182, %s196
      %p198 = scmp.eq.s32.totalorder %s25, 0
      %p199 = por %p197, %p198
      %s201 = sadd.s32 %s200, 1
      %p204 = scmp.eq.s32.totalorder %s19, 1
      %p205 = scmp.ne.s32.totalorder %s200, %s202
      %p206 = scmp.eq.s32.totalorder %s19, 0
      %p207 = por %p205, %p206
      %p208 = scmp.ne.s32.totalorder %s200, %s202
      %p209 = scmp.eq.s32.totalorder %s24, 1
      %p210 = por %p208, %p209
      %p211 = scmp.ne.s32.totalorder %s202, %s203
      %p212 = scmp.eq.s32.totalorder %s24, 0
      %p213 = por %p211, %p212
      %p214 = scmp.ne.s32.totalorder %s202, %s203
      %p215 = scmp.eq.s32.totalorder %s25, 1
      %p216 = por %p214, %p215
      %p218 = scmp.ne.s32.totalorder %s203, %s217
      %p219 = scmp.eq.s32.totalorder %s25, 0
      %p220 = por %p218, %p219
      %s222 = sadd.s32 %s221, 1
      %p225 = scmp.eq.s32.totalorder %s19, 1
      %p226 = scmp.ne.s32.totalorder %s221, %s223
      %p227 = scmp.eq.s32.totalorder %s19, 0
      %p228 = por %p226, %p227
      %p229 = scmp.ne.s32.totalorder %s221, %s223
      %p230 = scmp.eq.s32.totalorder %s24, 1
      %p231 = por %p229, %p230
      %p232 = scmp.ne.s32.totalorder %s223, %s224
      %p233 = scmp.eq.s32.totalorder %s24, 0
      %p234 = por %p232, %p233
      %p235 = scmp.ne.s32.totalorder %s223, %s224
      %p236 = scmp.eq.s32.totalorder %s25, 1
      %p237 = por %p235, %p236
      %p239 = scmp.ne.s32.totalorder %s224, %s238
      %p240 = scmp.eq.s32.totalorder %s25, 0
      %p241 = por %p239, %p240
      %s242 = ssub.s32 %s19, %s26
      %p243 = scmp.eq.s32.totalorder %s242, 0
      %s245 = sadd.s32 %s244, 1
      %s246 = scalar_select %p243, %s244, %s245
      %p249 = pneg %p243
      %p250 = scmp.eq.s32.totalorder %s19, 1
      %p251 = por %p249, %p250
      %p252 = scmp.ne.s32.totalorder %s244, %s247
      %p253 = scmp.eq.s32.totalorder %s19, 0
      %p254 = por %p252, %p253
      %p255 = scmp.ne.s32.totalorder %s244, %s247
      %p256 = scmp.eq.s32.totalorder %s24, 1
      %p257 = por %p255, %p256
      %p258 = scmp.ne.s32.totalorder %s247, %s248
      %p259 = scmp.eq.s32.totalorder %s24, 0
      %p260 = por %p258, %p259
      %p261 = scmp.ne.s32.totalorder %s247, %s248
      %p262 = scmp.eq.s32.totalorder %s25, 1
      %p263 = por %p261, %p262
      %p265 = scmp.ne.s32.totalorder %s248, %s264
      %p266 = scmp.eq.s32.totalorder %s25, 0
      %p267 = por %p265, %p266
      %p268 = scmp.le.s32.totalorder 1, %s19
      %p269 = scmp.lt.s32.totalorder %s19, 3
      %p270 = pnand %p268, %p269
      %p271 = pneg %p270
      // Predicated region
      $region9: #{tpu_custom_call.1} parent=5 // pred_check
        _
      $region10: #{tpu_custom_call.1} parent=5 // pred_check_branch
        %273 = sbr.rel (%p270) target = $region12
      $region11: #{tpu_custom_call.1} parent=5 // pred_region
        %s274 = ssub.s32 %s19, 1
        // Predicated region
        $region13: #{tpu_custom_call.1} parent=11 // pred_check
          %p275 = pneg %p66
        $region14: #{tpu_custom_call.1} parent=11 // pred_check_branch
          %277 = sbr.rel (%p275) target = $region16
        $region15: #{tpu_custom_call.1} parent=11 // pred_region
          _
        $region16: #{tpu_custom_call.1} parent=11 // pred_fallthru
          _
        // Predicated region
        $region17: #{tpu_custom_call.1} parent=11 // pred_check
          %p278 = pneg %p87
        $region18: #{tpu_custom_call.1} parent=11 // pred_check_branch
          %280 = sbr.rel (%p278) target = $region20
        $region19: #{tpu_custom_call.1} parent=11 // pred_region
          _
        $region20: #{tpu_custom_call.1} parent=11 // pred_fallthru
          _
        // Predicated region
        $region21: #{tpu_custom_call.1} parent=11 // pred_check
          %p281 = pneg %p108
        $region22: #{tpu_custom_call.1} parent=11 // pred_check_branch
          %283 = sbr.rel (%p281) target = $region24
        $region23: #{tpu_custom_call.1} parent=11 // pred_region
          _
        $region24: #{tpu_custom_call.1} parent=11 // pred_fallthru
          _
        // Predicated region
        $region25: #{tpu_custom_call.1} parent=11 // pred_check
          %p284 = pneg %p129
        $region26: #{tpu_custom_call.1} parent=11 // pred_check_branch
          %286 = sbr.rel (%p284) target = $region28
        $region27: #{tpu_custom_call.1} parent=11 // pred_region
          _
        $region28: #{tpu_custom_call.1} parent=11 // pred_fallthru
          _
        // Predicated region
        $region29: #{tpu_custom_call.1} parent=11 // pred_check
          %p287 = pneg %p150
        $region30: #{tpu_custom_call.1} parent=11 // pred_check_branch
          %289 = sbr.rel (%p287) target = $region32
        $region31: #{tpu_custom_call.1} parent=11 // pred_region
          _
        $region32: #{tpu_custom_call.1} parent=11 // pred_fallthru
          _
        // Predicated region
        $region33: #{tpu_custom_call.1} parent=11 // pred_check
          %p290 = pneg %p171
        $region34: #{tpu_custom_call.1} parent=11 // pred_check_branch
          %292 = sbr.rel (%p290) target = $region36
        $region35: #{tpu_custom_call.1} parent=11 // pred_region
          _
        $region36: #{tpu_custom_call.1} parent=11 // pred_fallthru
          _
        // Predicated region
        $region37: #{tpu_custom_call.1} parent=11 // pred_check
          %p293 = pneg %p192
        $region38: #{tpu_custom_call.1} parent=11 // pred_check_branch
          %295 = sbr.rel (%p293) target = $region40
        $region39: #{tpu_custom_call.1} parent=11 // pred_region
          _
        $region40: #{tpu_custom_call.1} parent=11 // pred_fallthru
          _
        // Predicated region
        $region41: #{tpu_custom_call.1} parent=11 // pred_check
          %p296 = pneg %p213
        $region42: #{tpu_custom_call.1} parent=11 // pred_check_branch
          %298 = sbr.rel (%p296) target = $region44
        $region43: #{tpu_custom_call.1} parent=11 // pred_region
          _
        $region44: #{tpu_custom_call.1} parent=11 // pred_fallthru
          _
        // Predicated region
        $region45: #{tpu_custom_call.1} parent=11 // pred_check
          %p299 = pneg %p234
        $region46: #{tpu_custom_call.1} parent=11 // pred_check_branch
          %301 = sbr.rel (%p299) target = $region48
        $region47: #{tpu_custom_call.1} parent=11 // pred_region
          _
        $region48: #{tpu_custom_call.1} parent=11 // pred_fallthru
          _
      $region12: #{tpu_custom_call.1} parent=5 // pred_fallthru
        _
      %p302 = scmp.lt.s32.totalorder %s19, 2
      // Predicated region
      $region49: #{tpu_custom_call.1} parent=5 // pred_check
        %p303 = pneg %p302
      $region50: #{tpu_custom_call.1} parent=5 // pred_check_branch
        %305 = sbr.rel (%p303) target = $region52
      $region51: #{tpu_custom_call.1} parent=5 // pred_region
        // Predicated region
        $region53: #{tpu_custom_call.1} parent=51 // pred_check
          %p306 = pneg %p39
        $region54: #{tpu_custom_call.1} parent=51 // pred_check_branch
          %308 = sbr.rel (%p306) target = $region56
        $region55: #{tpu_custom_call.1} parent=51 // pred_region
          %p309 = scmp.lt.s32.totalorder %s19, 1
          %s310 = scalar_select %p309, %s19, 1
          %s311 = smul.addr %s310, 8
          %s312 = scalar_lea.vmem %s0, %s311
        $region56: #{tpu_custom_call.1} parent=51 // pred_fallthru
          _
      $region52: #{tpu_custom_call.1} parent=5 // pred_fallthru
        _
      %p313 = scmp.le.s32.totalorder 1, %s19
      %p314 = scmp.lt.s32.totalorder %s19, 3
      %p315 = pnand %p313, %p314
      %p316 = pneg %p315
      // Predicated region
      $region57: #{tpu_custom_call.1} parent=5 // pred_check
        _
      $region58: #{tpu_custom_call.1} parent=5 // pred_check_branch
        %318 = sbr.rel (%p315) target = $region60
      $region59: #{tpu_custom_call.1} parent=5 // pred_region
        %s319 = ssub.s32 %s19, 1
        %p320 = scmp.lt.s32.totalorder %s24, 1
        %s321 = scalar_select %p320, %s24, 1
        %s322 = smul.addr %s321, 8
        %s323 = scalar_lea.vmem %s0, %s322
        %p324 = pneg %p45
        %p325 = pneg %p42
        %p326 = pneg %p66
        %p327 = pneg %p63
        %p328 = pneg %p87
        %p329 = pneg %p84
        %p330 = pneg %p108
        %p331 = pneg %p105
        %p332 = pneg %p129
        %p333 = pneg %p126
        %p334 = pneg %p150
        %p335 = pneg %p147
        %p336 = pneg %p171
        %p337 = pneg %p168
        %p338 = pneg %p192
        %p339 = pneg %p189
        %p340 = pneg %p213
        %p341 = pneg %p210
        %p342 = pneg %p234
        %p343 = pneg %p231
        %p344 = pneg %p260
        %p345 = pneg %p257
        %s346 = sand.u32 %s247, 1
        %s347 = scalar_lea.sflag [#allocation3], %s346
        %s348 = sand.u32 %s247, 1
        %s349 = smul.addr %s348, 8
        %s350 = scalar_lea.vmem [#allocation2], %s349
        %p351 = scmp.lt.s32.totalorder %s24, 1
        %s352 = scalar_select %p351, %s24, 1
        %s353 = smul.addr %s352, 8
        %s354 = scalar_lea.vmem %s0, %s353
        %v356 = vld [vmem:[%s354] sm:$0xff]
        %v357 = vpack.c.bf16 %v356, %v356
        %v358 = vld [vmem:[%s1] sm:$0xf]
        %v359 = vld [vmem:[%s1 + $0x4] sm:$0xf]
        %v360 = vld [vmem:[%s1 + $0x8] sm:$0xf]
        %v361 = vld [vmem:[%s1 + $0xc] sm:$0xf]
        %v366 = vunpack.c.l.b16 %v358
        %v367 = vunpack.c.l.b16 %v359
        %v368 = vunpack.c.l.b16 %v360
        %v369 = vunpack.c.l.b16 %v361
        %v370 = vpack.c.b16 %v367, %v366
        %v371 = vpack.c.b16 %v369, %v368
        %vm374 = vcmask 261120
        %v376 = vsel %vm374, %v357, 0
        %378 = vmatprep.subr.bf16.mxu0 0
        %379 = vmatpush1.bf16.msra.mxu0 %v370
        %380 = vmatprep.subr.bf16.mxu0 0
        %381 = vmatpush1.bf16.msra.mxu0 %v371
        %382 = vmatprep.subr.bf16.mxu0 0
        %383 = vmatpush1.bf16.msra.mxu0 0
        %384 = vmatprep.subr.bf16.mxu0 0
        %385 = vmatpush1.bf16.msra.mxu0 0
        %386 = vmatprep.subr.bf16.mxu0 0
        %387 = vmatpush1.bf16.msra.mxu0 0
        %388 = vmatprep.subr.bf16.mxu0 0
        %389 = vmatpush1.bf16.msra.mxu0 0
        %390 = vmatprep.subr.bf16.mxu0 0
        %391 = vmatpush1.bf16.msra.mxu0 0
        %392 = vmatprep.subr.bf16.mxu0 0
        %393 = vmatpush1.bf16.msra.mxu0 0
        %394 = vmatprep.subr.bf16.mxu0 0
        %395 = vmatpush1.bf16.msra.mxu0 0
        %396 = vmatprep.subr.bf16.mxu0 0
        %397 = vmatpush1.bf16.msra.mxu0 0
        %398 = vmatprep.subr.bf16.mxu0 0
        %399 = vmatpush1.bf16.msra.mxu0 0
        %400 = vmatprep.subr.bf16.mxu0 0
        %401 = vmatpush1.bf16.msra.mxu0 0
        %402 = vmatprep.subr.bf16.mxu0 0
        %403 = vmatpush1.bf16.msra.mxu0 0
        %404 = vmatprep.subr.bf16.mxu0 0
        %405 = vmatpush1.bf16.msra.mxu0 0
        %406 = vmatprep.subr.bf16.mxu0 0
        %407 = vmatpush1.bf16.msra.mxu0 0
        %408 = vmatprep.subr.bf16.mxu0 0
        %409 = vmatpush1.bf16.msra.mxu0 0
        %410 = vmatprep.mubr.bf16.mxu0 0
        %411 = vmatmul.mubr.bf16.gmra.mrb[0].mxu0 %v376
        %v412 = vpop.f32.mrb[0].mxu0
        %v413 = vadd.f32 0.0, %v412
        %v414 = vpop.f32.mrb[0].mxu0
        %v415 = vpop.f32.mrb[0].mxu0
        %v416 = vpop.f32.mrb[0].mxu0
        %417 = vdwg.mxu0
        %v418 = vpack.c.bf16 %v413, %v413
        %420 = vrot.lane.b32.xlu0 %v418, 120
        %v421 = vpop.permute.xlu0 %420
        %422 = vrot.lane.b32.xlu0 %v418, 112
        %v423 = vpop.permute.xlu0 %422
        %424 = vrot.lane.b32.xlu0 %v418, 104
        %v425 = vpop.permute.xlu0 %424
        %426 = vrot.lane.b32.xlu0 %v418, 96
        %v427 = vpop.permute.xlu0 %426
        %vm428 = vcmask 64512
        %v430 = vsel %vm428, %v418, 0
        %v433 = vsel %vm428, %v427, 0
        %435 = vmatprep.subr.bf16.mxu0 0
        %436 = vmatpush1.bf16.xpose.msra.mxu0 %v433
        %437 = vmatprep.subr.bf16.mxu0 0
        %438 = vmatpush1.bf16.xpose.msra.mxu0 0
        %439 = vmatprep.subr.bf16.mxu0 0
        %440 = vmatpush1.bf16.xpose.msra.mxu0 0
        %441 = vmatprep.subr.bf16.mxu0 0
        %442 = vmatpush1.bf16.xpose.msra.mxu0 0
        %443 = vmatprep.subr.bf16.mxu0 0
        %444 = vmatpush1.bf16.xpose.msra.mxu0 0
        %445 = vmatprep.subr.bf16.mxu0 0
        %446 = vmatpush1.bf16.xpose.msra.mxu0 0
        %447 = vmatprep.subr.bf16.mxu0 0
        %448 = vmatpush1.bf16.xpose.msra.mxu0 0
        %449 = vmatprep.subr.bf16.mxu0 0
        %450 = vmatpush1.bf16.xpose.msra.mxu0 0
        %451 = vmatprep.subr.bf16.mxu0 0
        %452 = vmatpush1.bf16.xpose.msra.mxu0 0
        %453 = vmatprep.subr.bf16.mxu0 0
        %454 = vmatpush1.bf16.xpose.msra.mxu0 0
        %455 = vmatprep.subr.bf16.mxu0 0
        %456 = vmatpush1.bf16.xpose.msra.mxu0 0
        %457 = vmatprep.subr.bf16.mxu0 0
        %458 = vmatpush1.bf16.xpose.msra.mxu0 0
        %459 = vmatprep.subr.bf16.mxu0 0
        %460 = vmatpush1.bf16.xpose.msra.mxu0 0
        %461 = vmatprep.subr.bf16.mxu0 0
        %462 = vmatpush1.bf16.xpose.msra.mxu0 0
        %463 = vmatprep.subr.bf16.mxu0 0
        %464 = vmatpush1.bf16.xpose.msra.mxu0 0
        %465 = vmatprep.subr.bf16.mxu0 0
        %466 = vmatpush1.bf16.xpose.msra.mxu0 0
        %467 = vmatprep.mubr.bf16.mxu0 0
        %468 = vmatmul.mubr.bf16.gmra.mrb[0].mxu0 %v430
        %v469 = vpop.f32.mrb[0].mxu0
        %v470 = vadd.f32 0.0, %v469
        %v471 = vpop.f32.mrb[0].mxu0
        %v472 = vpop.f32.mrb[0].mxu0
        %v473 = vpop.f32.mrb[0].mxu0
        %474 = vdwg.mxu0
        %475 = vrot.lane.b32.xlu0 %v421, 96
        %v476 = vpop.permute.xlu0 %475
        %v478 = vsel %vm428, %v421, 0
        %v481 = vsel %vm428, %v476, 0
        %483 = vmatprep.subr.bf16.mxu0 0
        %484 = vmatpush1.bf16.xpose.msra.mxu0 %v481
        %485 = vmatprep.subr.bf16.mxu0 0
        %486 = vmatpush1.bf16.xpose.msra.mxu0 0
        %487 = vmatprep.subr.bf16.mxu0 0
        %488 = vmatpush1.bf16.xpose.msra.mxu0 0
        %489 = vmatprep.subr.bf16.mxu0 0
        %490 = vmatpush1.bf16.xpose.msra.mxu0 0
        %491 = vmatprep.subr.bf16.mxu0 0
        %492 = vmatpush1.bf16.xpose.msra.mxu0 0
        %493 = vmatprep.subr.bf16.mxu0 0
        %494 = vmatpush1.bf16.xpose.msra.mxu0 0
        %495 = vmatprep.subr.bf16.mxu0 0
        %496 = vmatpush1.bf16.xpose.msra.mxu0 0
        %497 = vmatprep.subr.bf16.mxu0 0
        %498 = vmatpush1.bf16.xpose.msra.mxu0 0
        %499 = vmatprep.subr.bf16.mxu0 0
        %500 = vmatpush1.bf16.xpose.msra.mxu0 0
        %501 = vmatprep.subr.bf16.mxu0 0
        %502 = vmatpush1.bf16.xpose.msra.mxu0 0
        %503 = vmatprep.subr.bf16.mxu0 0
        %504 = vmatpush1.bf16.xpose.msra.mxu0 0
        %505 = vmatprep.subr.bf16.mxu0 0
        %506 = vmatpush1.bf16.xpose.msra.mxu0 0
        %507 = vmatprep.subr.bf16.mxu0 0
        %508 = vmatpush1.bf16.xpose.msra.mxu0 0
        %509 = vmatprep.subr.bf16.mxu0 0
        %510 = vmatpush1.bf16.xpose.msra.mxu0 0
        %511 = vmatprep.subr.bf16.mxu0 0
        %512 = vmatpush1.bf16.xpose.msra.mxu0 0
        %513 = vmatprep.subr.bf16.mxu0 0
        %514 = vmatpush1.bf16.xpose.msra.mxu0 0
        %515 = vmatprep.mubr.bf16.mxu0 0
        %516 = vmatmul.mubr.bf16.gmra.mrb[0].mxu0 %v478
        %v517 = vpop.f32.mrb[0].mxu0
        %v518 = vadd.f32 0.0, %v517
        %v519 = vpop.f32.mrb[0].mxu0
        %v520 = vpop.f32.mrb[0].mxu0
        %v521 = vpop.f32.mrb[0].mxu0
        %522 = vdwg.mxu0
        %523 = vrot.lane.b32.xlu0 %v423, 96
        %v524 = vpop.permute.xlu0 %523
        %v526 = vsel %vm428, %v423, 0
        %v529 = vsel %vm428, %v524, 0
        %531 = vmatprep.subr.bf16.mxu0 0
        %532 = vmatpush1.bf16.xpose.msra.mxu0 %v529
        %533 = vmatprep.subr.bf16.mxu0 0
        %534 = vmatpush1.bf16.xpose.msra.mxu0 0
        %535 = vmatprep.subr.bf16.mxu0 0
        %536 = vmatpush1.bf16.xpose.msra.mxu0 0
        %537 = vmatprep.subr.bf16.mxu0 0
        %538 = vmatpush1.bf16.xpose.msra.mxu0 0
        %539 = vmatprep.subr.bf16.mxu0 0
        %540 = vmatpush1.bf16.xpose.msra.mxu0 0
        %541 = vmatprep.subr.bf16.mxu0 0
        %542 = vmatpush1.bf16.xpose.msra.mxu0 0
        %543 = vmatprep.subr.bf16.mxu0 0
        %544 = vmatpush1.bf16.xpose.msra.mxu0 0
        %545 = vmatprep.subr.bf16.mxu0 0
        %546 = vmatpush1.bf16.xpose.msra.mxu0 0
        %547 = vmatprep.subr.bf16.mxu0 0
        %548 = vmatpush1.bf16.xpose.msra.mxu0 0
        %549 = vmatprep.subr.bf16.mxu0 0
        %550 = vmatpush1.bf16.xpose.msra.mxu0 0
        %551 = vmatprep.subr.bf16.mxu0 0
        %552 = vmatpush1.bf16.xpose.msra.mxu0 0
        %553 = vmatprep.subr.bf16.mxu0 0
        %554 = vmatpush1.bf16.xpose.msra.mxu0 0
        %555 = vmatprep.subr.bf16.mxu0 0
        %556 = vmatpush1.bf16.xpose.msra.mxu0 0
        %557 = vmatprep.subr.bf16.mxu0 0
        %558 = vmatpush1.bf16.xpose.msra.mxu0 0
        %559 = vmatprep.subr.bf16.mxu0 0
        %560 = vmatpush1.bf16.xpose.msra.mxu0 0
        %561 = vmatprep.subr.bf16.mxu0 0
        %562 = vmatpush1.bf16.xpose.msra.mxu0 0
        %563 = vmatprep.mubr.bf16.mxu0 0
        %564 = vmatmul.mubr.bf16.gmra.mrb[0].mxu0 %v526
        %v565 = vpop.f32.mrb[0].mxu0
        %v566 = vadd.f32 0.0, %v565
        %v567 = vpop.f32.mrb[0].mxu0
        %v568 = vpop.f32.mrb[0].mxu0
        %v569 = vpop.f32.mrb[0].mxu0
        %570 = vdwg.mxu0
        %571 = vrot.lane.b32.xlu0 %v425, 96
        %v572 = vpop.permute.xlu0 %571
        %v574 = vsel %vm428, %v425, 0
        %v577 = vsel %vm428, %v572, 0
        %579 = vmatprep.subr.bf16.mxu0 0
        %580 = vmatpush1.bf16.xpose.msra.mxu0 %v577
        %581 = vmatprep.subr.bf16.mxu0 0
        %582 = vmatpush1.bf16.xpose.msra.mxu0 0
        %583 = vmatprep.subr.bf16.mxu0 0
        %584 = vmatpush1.bf16.xpose.msra.mxu0 0
        %585 = vmatprep.subr.bf16.mxu0 0
        %586 = vmatpush1.bf16.xpose.msra.mxu0 0
        %587 = vmatprep.subr.bf16.mxu0 0
        %588 = vmatpush1.bf16.xpose.msra.mxu0 0
        %589 = vmatprep.subr.bf16.mxu0 0
        %590 = vmatpush1.bf16.xpose.msra.mxu0 0
        %591 = vmatprep.subr.bf16.mxu0 0
        %592 = vmatpush1.bf16.xpose.msra.mxu0 0
        %593 = vmatprep.subr.bf16.mxu0 0
        %594 = vmatpush1.bf16.xpose.msra.mxu0 0
        %595 = vmatprep.subr.bf16.mxu0 0
        %596 = vmatpush1.bf16.xpose.msra.mxu0 0
        %597 = vmatprep.subr.bf16.mxu0 0
        %598 = vmatpush1.bf16.xpose.msra.mxu0 0
        %599 = vmatprep.subr.bf16.mxu0 0
        %600 = vmatpush1.bf16.xpose.msra.mxu0 0
        %601 = vmatprep.subr.bf16.mxu0 0
        %602 = vmatpush1.bf16.xpose.msra.mxu0 0
        %603 = vmatprep.subr.bf16.mxu0 0
        %604 = vmatpush1.bf16.xpose.msra.mxu0 0
        %605 = vmatprep.subr.bf16.mxu0 0
        %606 = vmatpush1.bf16.xpose.msra.mxu0 0
        %607 = vmatprep.subr.bf16.mxu0 0
        %608 = vmatpush1.bf16.xpose.msra.mxu0 0
        %609 = vmatprep.subr.bf16.mxu0 0
        %610 = vmatpush1.bf16.xpose.msra.mxu0 0
        %611 = vmatprep.mubr.bf16.mxu0 0
        %612 = vmatmul.mubr.bf16.gmra.mrb[0].mxu0 %v574
        %v613 = vpop.f32.mrb[0].mxu0
        %v614 = vadd.f32 0.0, %v613
        %v615 = vpop.f32.mrb[0].mxu0
        %v616 = vpop.f32.mrb[0].mxu0
        %v617 = vpop.f32.mrb[0].mxu0
        %618 = vdwg.mxu0
        %v619 = vsel %vm428, %v470, -inf
        %620 = vmax.xlane.f32.xlu0 %v619
        %v621 = vpop.xlane.xlu0 %620
        %v622 = vsel %vm428, %v518, -inf
        %623 = vmax.xlane.f32.xlu0 %v622
        %v624 = vpop.xlane.xlu0 %623
        %v625 = vsel %vm428, %v566, -inf
        %626 = vmax.xlane.f32.xlu0 %v625
        %v627 = vpop.xlane.xlu0 %626
        %v628 = vsel %vm428, %v614, -inf
        %629 = vmax.xlane.f32.xlu0 %v628
        %v630 = vpop.xlane.xlu0 %629
        %v631 = vsub.f32 %v470, %v621
        %v632 = vsub.f32 %v518, %v624
        %v633 = vsub.f32 %v566, %v627
        %v634 = vsub.f32 %v614, %v630
        %v635 = vmul.f32 %v631, 1.442695
        %v636 = vpow.pop %v635
        %v637 = vmul.f32 %v632, 1.442695
        %v638 = vpow.pop %v637
        %v639 = vmul.f32 %v633, 1.442695
        %v640 = vpow.pop %v639
        %v641 = vmul.f32 %v634, 1.442695
        %v642 = vpow.pop %v641
        %v643 = vsel %vm428, %v636, 0.0
        %644 = vadd.xlane.f32.xlu0 %v643
        %v645 = vpop.xlane.xlu0 %644
        %v646 = vsel %vm428, %v638, 0.0
        %647 = vadd.xlane.f32.xlu0 %v646
        %v648 = vpop.xlane.xlu0 %647
        %v649 = vsel %vm428, %v640, 0.0
        %650 = vadd.xlane.f32.xlu0 %v649
        %v651 = vpop.xlane.xlu0 %650
        %v652 = vsel %vm428, %v642, 0.0
        %653 = vadd.xlane.f32.xlu0 %v652
        %v654 = vpop.xlane.xlu0 %653
        %v655 = vrcp.pop %v645
        %v656 = vmul.f32 %v636, %v655
        %v657 = vrcp.pop %v648
        %v658 = vmul.f32 %v638, %v657
        %v659 = vrcp.pop %v651
        %v660 = vmul.f32 %v640, %v659
        %v661 = vrcp.pop %v654
        %v662 = vmul.f32 %v642, %v661
        %v663 = vpack.c.bf16 %v656, %v656
        %v664 = vpack.c.bf16 %v658, %v658
        %v665 = vpack.c.bf16 %v660, %v660
        %v666 = vpack.c.bf16 %v662, %v662
        %667 = vrot.lane.b32.xlu0 %v418, 64
        %v668 = vpop.permute.xlu0 %667
        %v670 = vsel %vm428, %v663, 0
        %vm672 = vcmask 1043456
        %v674 = vsel %vm672, %v668, 0
        %676 = vmatprep.subr.bf16.mxu0 0
        %677 = vmatpush1.bf16.msra.mxu0 %v674
        %678 = vmatprep.subr.bf16.mxu0 0
        %679 = vmatpush1.bf16.msra.mxu0 0
        %680 = vmatprep.subr.bf16.mxu0 0
        %681 = vmatpush1.bf16.msra.mxu0 0
        %682 = vmatprep.subr.bf16.mxu0 0
        %683 = vmatpush1.bf16.msra.mxu0 0
        %684 = vmatprep.subr.bf16.mxu0 0
        %685 = vmatpush1.bf16.msra.mxu0 0
        %686 = vmatprep.subr.bf16.mxu0 0
        %687 = vmatpush1.bf16.msra.mxu0 0
        %688 = vmatprep.subr.bf16.mxu0 0
        %689 = vmatpush1.bf16.msra.mxu0 0
        %690 = vmatprep.subr.bf16.mxu0 0
        %691 = vmatpush1.bf16.msra.mxu0 0
        %692 = vmatprep.subr.bf16.mxu0 0
        %693 = vmatpush1.bf16.msra.mxu0 0
        %694 = vmatprep.subr.bf16.mxu0 0
        %695 = vmatpush1.bf16.msra.mxu0 0
        %696 = vmatprep.subr.bf16.mxu0 0
        %697 = vmatpush1.bf16.msra.mxu0 0
        %698 = vmatprep.subr.bf16.mxu0 0
        %699 = vmatpush1.bf16.msra.mxu0 0
        %700 = vmatprep.subr.bf16.mxu0 0
        %701 = vmatpush1.bf16.msra.mxu0 0
        %702 = vmatprep.subr.bf16.mxu0 0
        %703 = vmatpush1.bf16.msra.mxu0 0
        %704 = vmatprep.subr.bf16.mxu0 0
        %705 = vmatpush1.bf16.msra.mxu0 0
        %706 = vmatprep.subr.bf16.mxu0 0
        %707 = vmatpush1.bf16.msra.mxu0 0
        %708 = vmatprep.mubr.bf16.mxu0 0
        %709 = vmatmul.mubr.bf16.gmra.mrb[0].mxu0 %v670
        %v710 = vpop.f32.mrb[0].mxu0
        %v711 = vadd.f32 0.0, %v710
        %v712 = vpop.f32.mrb[0].mxu0
        %v713 = vpop.f32.mrb[0].mxu0
        %v714 = vpop.f32.mrb[0].mxu0
        %715 = vdwg.mxu0
        %716 = vrot.lane.b32.xlu0 %v421, 64
        %v717 = vpop.permute.xlu0 %716
        %v719 = vsel %vm428, %v664, 0
        %v722 = vsel %vm672, %v717, 0
        %724 = vmatprep.subr.bf16.mxu0 0
        %725 = vmatpush1.bf16.msra.mxu0 %v722
        %726 = vmatprep.subr.bf16.mxu0 0
        %727 = vmatpush1.bf16.msra.mxu0 0
        %728 = vmatprep.subr.bf16.mxu0 0
        %729 = vmatpush1.bf16.msra.mxu0 0
        %730 = vmatprep.subr.bf16.mxu0 0
        %731 = vmatpush1.bf16.msra.mxu0 0
        %732 = vmatprep.subr.bf16.mxu0 0
        %733 = vmatpush1.bf16.msra.mxu0 0
        %734 = vmatprep.subr.bf16.mxu0 0
        %735 = vmatpush1.bf16.msra.mxu0 0
        %736 = vmatprep.subr.bf16.mxu0 0
        %737 = vmatpush1.bf16.msra.mxu0 0
        %738 = vmatprep.subr.bf16.mxu0 0
        %739 = vmatpush1.bf16.msra.mxu0 0
        %740 = vmatprep.subr.bf16.mxu0 0
        %741 = vmatpush1.bf16.msra.mxu0 0
        %742 = vmatprep.subr.bf16.mxu0 0
        %743 = vmatpush1.bf16.msra.mxu0 0
        %744 = vmatprep.subr.bf16.mxu0 0
        %745 = vmatpush1.bf16.msra.mxu0 0
        %746 = vmatprep.subr.bf16.mxu0 0
        %747 = vmatpush1.bf16.msra.mxu0 0
        %748 = vmatprep.subr.bf16.mxu0 0
        %749 = vmatpush1.bf16.msra.mxu0 0
        %750 = vmatprep.subr.bf16.mxu0 0
        %751 = vmatpush1.bf16.msra.mxu0 0
        %752 = vmatprep.subr.bf16.mxu0 0
        %753 = vmatpush1.bf16.msra.mxu0 0
        %754 = vmatprep.subr.bf16.mxu0 0
        %755 = vmatpush1.bf16.msra.mxu0 0
        %756 = vmatprep.mubr.bf16.mxu0 0
        %757 = vmatmul.mubr.bf16.gmra.mrb[0].mxu0 %v719
        %v758 = vpop.f32.mrb[0].mxu0
        %v759 = vadd.f32 0.0, %v758
        %v760 = vpop.f32.mrb[0].mxu0
        %v761 = vpop.f32.mrb[0].mxu0
        %v762 = vpop.f32.mrb[0].mxu0
        %763 = vdwg.mxu0
        %764 = vrot.lane.b32.xlu0 %v423, 64
        %v765 = vpop.permute.xlu0 %764
        %v767 = vsel %vm428, %v665, 0
        %v770 = vsel %vm672, %v765, 0
        %772 = vmatprep.subr.bf16.mxu0 0
        %773 = vmatpush1.bf16.msra.mxu0 %v770
        %774 = vmatprep.subr.bf16.mxu0 0
        %775 = vmatpush1.bf16.msra.mxu0 0
        %776 = vmatprep.subr.bf16.mxu0 0
        %777 = vmatpush1.bf16.msra.mxu0 0
        %778 = vmatprep.subr.bf16.mxu0 0
        %779 = vmatpush1.bf16.msra.mxu0 0
        %780 = vmatprep.subr.bf16.mxu0 0
        %781 = vmatpush1.bf16.msra.mxu0 0
        %782 = vmatprep.subr.bf16.mxu0 0
        %783 = vmatpush1.bf16.msra.mxu0 0
        %784 = vmatprep.subr.bf16.mxu0 0
        %785 = vmatpush1.bf16.msra.mxu0 0
        %786 = vmatprep.subr.bf16.mxu0 0
        %787 = vmatpush1.bf16.msra.mxu0 0
        %788 = vmatprep.subr.bf16.mxu0 0
        %789 = vmatpush1.bf16.msra.mxu0 0
        %790 = vmatprep.subr.bf16.mxu0 0
        %791 = vmatpush1.bf16.msra.mxu0 0
        %792 = vmatprep.subr.bf16.mxu0 0
        %793 = vmatpush1.bf16.msra.mxu0 0
        %794 = vmatprep.subr.bf16.mxu0 0
        %795 = vmatpush1.bf16.msra.mxu0 0
        %796 = vmatprep.subr.bf16.mxu0 0
        %797 = vmatpush1.bf16.msra.mxu0 0
        %798 = vmatprep.subr.bf16.mxu0 0
        %799 = vmatpush1.bf16.msra.mxu0 0
        %800 = vmatprep.subr.bf16.mxu0 0
        %801 = vmatpush1.bf16.msra.mxu0 0
        %802 = vmatprep.subr.bf16.mxu0 0
        %803 = vmatpush1.bf16.msra.mxu0 0
        %804 = vmatprep.mubr.bf16.mxu0 0
        %805 = vmatmul.mubr.bf16.gmra.mrb[0].mxu0 %v767
        %v806 = vpop.f32.mrb[0].mxu0
        %v807 = vadd.f32 0.0, %v806
        %v808 = vpop.f32.mrb[0].mxu0
        %v809 = vpop.f32.mrb[0].mxu0
        %v810 = vpop.f32.mrb[0].mxu0
        %811 = vdwg.mxu0
        %812 = vrot.lane.b32.xlu0 %v425, 64
        %v813 = vpop.permute.xlu0 %812
        %v815 = vsel %vm428, %v666, 0
        %v818 = vsel %vm672, %v813, 0
        %820 = vmatprep.subr.bf16.mxu0 0
        %821 = vmatpush1.bf16.msra.mxu0 %v818
        %822 = vmatprep.subr.bf16.mxu0 0
        %823 = vmatpush1.bf16.msra.mxu0 0
        %824 = vmatprep.subr.bf16.mxu0 0
        %825 = vmatpush1.bf16.msra.mxu0 0
        %826 = vmatprep.subr.bf16.mxu0 0
        %827 = vmatpush1.bf16.msra.mxu0 0
        %828 = vmatprep.subr.bf16.mxu0 0
        %829 = vmatpush1.bf16.msra.mxu0 0
        %830 = vmatprep.subr.bf16.mxu0 0
        %831 = vmatpush1.bf16.msra.mxu0 0
        %832 = vmatprep.subr.bf16.mxu0 0
        %833 = vmatpush1.bf16.msra.mxu0 0
        %834 = vmatprep.subr.bf16.mxu0 0
        %835 = vmatpush1.bf16.msra.mxu0 0
        %836 = vmatprep.subr.bf16.mxu0 0
        %837 = vmatpush1.bf16.msra.mxu0 0
        %838 = vmatprep.subr.bf16.mxu0 0
        %839 = vmatpush1.bf16.msra.mxu0 0
        %840 = vmatprep.subr.bf16.mxu0 0
        %841 = vmatpush1.bf16.msra.mxu0 0
        %842 = vmatprep.subr.bf16.mxu0 0
        %843 = vmatpush1.bf16.msra.mxu0 0
        %844 = vmatprep.subr.bf16.mxu0 0
        %845 = vmatpush1.bf16.msra.mxu0 0
        %846 = vmatprep.subr.bf16.mxu0 0
        %847 = vmatpush1.bf16.msra.mxu0 0
        %848 = vmatprep.subr.bf16.mxu0 0
        %849 = vmatpush1.bf16.msra.mxu0 0
        %850 = vmatprep.subr.bf16.mxu0 0
        %851 = vmatpush1.bf16.msra.mxu0 0
        %852 = vmatprep.mubr.bf16.mxu0 0
        %853 = vmatmul.mubr.bf16.gmra.mrb[0].mxu0 %v815
        %v854 = vpop.f32.mrb[0].mxu0
        %v855 = vadd.f32 0.0, %v854
        %v856 = vpop.f32.mrb[0].mxu0
        %v857 = vpop.f32.mrb[0].mxu0
        %v858 = vpop.f32.mrb[0].mxu0
        %859 = vdwg.mxu0
        %861 = vrot.lane.b32.xlu0 %v759, 8
        %v862 = vpop.permute.xlu0 %861
        %865 = vrot.lane.b32.xlu0 %v807, 16
        %v866 = vpop.permute.xlu0 %865
        %869 = vrot.lane.b32.xlu0 %v855, 24
        %v870 = vpop.permute.xlu0 %869
        %v872 = vsel %vm428, %v711, %v862
        %vm873 = vcmask 130048
        %v874 = vsel %vm873, %v872, %v866
        %vm875 = vcmask 195584
        %v876 = vsel %vm875, %v874, %v870
        %v877 = vadd.f32 %v356, %v876
        %v878 = vld [vmem:[%s6] sm:$0x1]
        %v879 = vld [vmem:[%s7] sm:$0x1]
        %v880 = vsel %vm374, %v877, 0.0
        %881 = vadd.xlane.f32.xlu0 %v880
        %v882 = vpop.xlane.xlu0 %881
        %v883 = vrcp.pop 32.0
        %v884 = vmul.f32 %v882, %v883
        %v885 = vsub.f32 %v877, %v884
        %v886 = vmul.f32 %v885, %v885
        %v887 = vsel %vm374, %v886, 0.0
        %888 = vadd.xlane.f32.xlu0 %v887
        %v889 = vpop.xlane.xlu0 %888
        %v890 = vmul.f32 %v889, %v883
        %v891 = vadd.f32 %v890, 1e-05
        %v892 = vrsqrt.pop %v891
        %v893 = vmul.f32 %v885, %v892
        %v895 = vlaneseq
        %v896 = vshrl.u32 %v895, 7
        %v897 = vsub.s32 0, %v896
        %v898 = vrot.slane %v878, %v897
        %v900 = vmul.f32 %v893, %v898
        %v902 = vlaneseq
        %v903 = vshrl.u32 %v902, 7
        %v904 = vsub.s32 0, %v903
        %v905 = vrot.slane %v879, %v904
        %v907 = vadd.f32 %v900, %v905
        %v908 = vpack.c.bf16 %v907, %v907
        %v909 = vld [vmem:[%s2] sm:$0xf]
        %v910 = vld [vmem:[%s2 + $0x4] sm:$0xf]
        %v911 = vld [vmem:[%s2 + $0x8] sm:$0xf]
        %v912 = vld [vmem:[%s2 + $0xc] sm:$0xf]
        %v913 = vld [vmem:[%s3] sm:$0x1]
        %v915 = vlaneseq
        %v916 = vshrl.u32 %v915, 7
        %v917 = vsub.s32 0, %v916
        %v918 = vrot.slane %v913, %v917
        %v924 = vunpack.c.l.b16 %v909
        %v925 = vunpack.c.l.b16 %v910
        %v926 = vunpack.c.l.b16 %v911
        %v927 = vunpack.c.l.b16 %v912
        %v928 = vpack.c.b16 %v925, %v924
        %v929 = vpack.c.b16 %v927, %v926
        %v933 = vsel %vm374, %v908, 0
        %935 = vmatprep.subr.bf16.mxu0 0
        %936 = vmatpush1.bf16.msra.mxu0 %v928
        %937 = vmatprep.subr.bf16.mxu0 0
        %938 = vmatpush1.bf16.msra.mxu0 %v929
        %939 = vmatprep.subr.bf16.mxu0 0
        %940 = vmatpush1.bf16.msra.mxu0 0
        %941 = vmatprep.subr.bf16.mxu0 0
        %942 = vmatpush1.bf16.msra.mxu0 0
        %943 = vmatprep.subr.bf16.mxu0 0
        %944 = vmatpush1.bf16.msra.mxu0 0
        %945 = vmatprep.subr.bf16.mxu0 0
        %946 = vmatpush1.bf16.msra.mxu0 0
        %947 = vmatprep.subr.bf16.mxu0 0
        %948 = vmatpush1.bf16.msra.mxu0 0
        %949 = vmatprep.subr.bf16.mxu0 0
        %950 = vmatpush1.bf16.msra.mxu0 0
        %951 = vmatprep.subr.bf16.mxu0 0
        %952 = vmatpush1.bf16.msra.mxu0 0
        %953 = vmatprep.subr.bf16.mxu0 0
        %954 = vmatpush1.bf16.msra.mxu0 0
        %955 = vmatprep.subr.bf16.mxu0 0
        %956 = vmatpush1.bf16.msra.mxu0 0
        %957 = vmatprep.subr.bf16.mxu0 0
        %958 = vmatpush1.bf16.msra.mxu0 0
        %959 = vmatprep.subr.bf16.mxu0 0
        %960 = vmatpush1.bf16.msra.mxu0 0
        %961 = vmatprep.subr.bf16.mxu0 0
        %962 = vmatpush1.bf16.msra.mxu0 0
        %963 = vmatprep.subr.bf16.mxu0 0
        %964 = vmatpush1.bf16.msra.mxu0 0
        %965 = vmatprep.subr.bf16.mxu0 0
        %966 = vmatpush1.bf16.msra.mxu0 0
        %967 = vmatprep.mubr.bf16.mxu0 0
        %968 = vmatmul.mubr.bf16.gmra.mrb[0].mxu0 %v933
        %v969 = vpop.f32.mrb[0].mxu0
        %v970 = vadd.f32 %v918, %v969
        %v971 = vpop.f32.mrb[0].mxu0
        %v972 = vpop.f32.mrb[0].mxu0
        %v973 = vpop.f32.mrb[0].mxu0
        %974 = vdwg.mxu0
        %v975 = vmax.f32 %v970, 0.0
        %v976 = vpack.c.bf16 %v975, %v975
        %v977 = vld [vmem:[%s4] sm:$0xf]
        %v978 = vld [vmem:[%s4 + $0x4] sm:$0xf]
        %v979 = vld [vmem:[%s4 + $0x8] sm:$0xf]
        %v980 = vld [vmem:[%s4 + $0xc] sm:$0xf]
        %v981 = vld [vmem:[%s4 + $0x10] sm:$0xf]
        %v982 = vld [vmem:[%s4 + $0x14] sm:$0xf]
        %v983 = vld [vmem:[%s4 + $0x18] sm:$0xf]
        %v984 = vld [vmem:[%s4 + $0x1c] sm:$0xf]
        %v985 = vld [vmem:[%s5] sm:$0x1]
        %v987 = vlaneseq
        %v988 = vshrl.u32 %v987, 7
        %v989 = vsub.s32 0, %v988
        %v990 = vrot.slane %v985, %v989
        %v1000 = vunpack.c.l.b16 %v977
        %v1001 = vunpack.c.l.b16 %v978
        %v1002 = vunpack.c.l.b16 %v979
        %v1003 = vunpack.c.l.b16 %v980
        %v1004 = vunpack.c.l.b16 %v981
        %v1005 = vunpack.c.l.b16 %v982
        %v1006 = vunpack.c.l.b16 %v983
        %v1007 = vunpack.c.l.b16 %v984
        %v1008 = vpack.c.b16 %v1001, %v1000
        %v1009 = vpack.c.b16 %v1003, %v1002
        %v1010 = vpack.c.b16 %v1005, %v1004
        %v1011 = vpack.c.b16 %v1007, %v1006
        %vm1016 = vcmask 523264
        %v1018 = vsel %vm1016, %v976, 0
        %1020 = vmatprep.subr.bf16.mxu0 0
        %1021 = vmatpush1.bf16.msra.mxu0 %v1008
        %1022 = vmatprep.subr.bf16.mxu0 0
        %1023 = vmatpush1.bf16.msra.mxu0 %v1009
        %1024 = vmatprep.subr.bf16.mxu0 0
        %1025 = vmatpush1.bf16.msra.mxu0 %v1010
        %1026 = vmatprep.subr.bf16.mxu0 0
        %1027 = vmatpush1.bf16.msra.mxu0 %v1011
        %1028 = vmatprep.subr.bf16.mxu0 0
        %1029 = vmatpush1.bf16.msra.mxu0 0
        %1030 = vmatprep.subr.bf16.mxu0 0
        %1031 = vmatpush1.bf16.msra.mxu0 0
        %1032 = vmatprep.subr.bf16.mxu0 0
        %1033 = vmatpush1.bf16.msra.mxu0 0
        %1034 = vmatprep.subr.bf16.mxu0 0
        %1035 = vmatpush1.bf16.msra.mxu0 0
        %1036 = vmatprep.subr.bf16.mxu0 0
        %1037 = vmatpush1.bf16.msra.mxu0 0
        %1038 = vmatprep.subr.bf16.mxu0 0
        %1039 = vmatpush1.bf16.msra.mxu0 0
        %1040 = vmatprep.subr.bf16.mxu0 0
        %1041 = vmatpush1.bf16.msra.mxu0 0
        %1042 = vmatprep.subr.bf16.mxu0 0
        %1043 = vmatpush1.bf16.msra.mxu0 0
        %1044 = vmatprep.subr.bf16.mxu0 0
        %1045 = vmatpush1.bf16.msra.mxu0 0
        %1046 = vmatprep.subr.bf16.mxu0 0
        %1047 = vmatpush1.bf16.msra.mxu0 0
        %1048 = vmatprep.subr.bf16.mxu0 0
        %1049 = vmatpush1.bf16.msra.mxu0 0
        %1050 = vmatprep.subr.bf16.mxu0 0
        %1051 = vmatpush1.bf16.msra.mxu0 0
        %1052 = vmatprep.mubr.bf16.mxu0 0
        %1053 = vmatmul.mubr.bf16.gmra.mrb[0].mxu0 %v1018
        %v1054 = vpop.f32.mrb[0].mxu0
        %v1055 = vadd.f32 %v990, %v1054
        %v1056 = vpop.f32.mrb[0].mxu0
        %v1057 = vpop.f32.mrb[0].mxu0
        %v1058 = vpop.f32.mrb[0].mxu0
        %1059 = vdwg.mxu0
        %v1060 = vadd.f32 %v907, %v1055
        %v1061 = vld [vmem:[%s8] sm:$0x1]
        %v1062 = vld [vmem:[%s9] sm:$0x1]
        %v1063 = vsel %vm374, %v1060, 0.0
        %1064 = vadd.xlane.f32.xlu0 %v1063
        %v1065 = vpop.xlane.xlu0 %1064
        %v1066 = vmul.f32 %v1065, %v883
        %v1067 = vsub.f32 %v1060, %v1066
        %v1068 = vmul.f32 %v1067, %v1067
        %v1069 = vsel %vm374, %v1068, 0.0
        %1070 = vadd.xlane.f32.xlu0 %v1069
        %v1071 = vpop.xlane.xlu0 %1070
        %v1072 = vmul.f32 %v1071, %v883
        %v1073 = vadd.f32 %v1072, 1e-05
        %v1074 = vrsqrt.pop %v1073
        %v1075 = vmul.f32 %v1067, %v1074
        %v1077 = vlaneseq
        %v1078 = vshrl.u32 %v1077, 7
        %v1079 = vsub.s32 0, %v1078
        %v1080 = vrot.slane %v1061, %v1079
        %v1082 = vmul.f32 %v1075, %v1080
        %v1084 = vlaneseq
        %v1085 = vshrl.u32 %v1084, 7
        %v1086 = vsub.s32 0, %v1085
        %v1087 = vrot.slane %v1062, %v1086
        %v1089 = vadd.f32 %v1082, %v1087
        %1090 = vst.msk [vmem:[%s350] sm:$0xff] %vm374, %v1089
        %s1091 = sand.u32 %s247, 1
        %s1092 = scalar_lea.sflag [#allocation3], %s1091
        %s1093 = sand.u32 %s247, 1
        %s1094 = smul.addr %s1093, 8
        %s1095 = scalar_lea.vmem [#allocation2], %s1094
        // Predicated region
        $region61: #{tpu_custom_call.1} parent=59 // pred_check
          %p1096 = pneg %p257
        $region62: #{tpu_custom_call.1} parent=59 // pred_check_branch
          %1098 = sbr.rel (%p1096) target = $region64
        $region63: #{tpu_custom_call.1} parent=59 // pred_region
          %s1100 = ssub.s32 128, 128
          %1101 = vsyncadd %s1092, %s1100
          %s1102 = smul.addr %s24, 128
          %s1103 = scalar_lea.hbm %s10, %s1102
          %s1105 = sshll.u32 %s1095, 4
          %s1106 = int_to_ptr.vmem [resolvable:$true] %s1105
          %1108 = dma.vmem_to_hbm [thread:$0]  %s1106, 128, %s1103, %s1092
        $region64: #{tpu_custom_call.1} parent=59 // pred_fallthru
          _
      $region60: #{tpu_custom_call.1} parent=5 // pred_fallthru
        _
      %p1109 = scmp.le.s32.totalorder 2, %s19
      // Predicated region
      $region65: #{tpu_custom_call.1} parent=5 // pred_check
        %p1110 = pneg %p1109
      $region66: #{tpu_custom_call.1} parent=5 // pred_check_branch
        %1112 = sbr.rel (%p1110) target = $region68
      $region67: #{tpu_custom_call.1} parent=5 // pred_region
        %s1113 = ssub.s32 %s19, 2
        // Predicated region
        $region69: #{tpu_custom_call.1} parent=67 // pred_check
          %p1114 = pneg %p263
        $region70: #{tpu_custom_call.1} parent=67 // pred_check_branch
          %1116 = sbr.rel (%p1114) target = $region72
        $region71: #{tpu_custom_call.1} parent=67 // pred_region
          %s1117 = sand.u32 %s248, 1
          %s1118 = scalar_lea.sflag [#allocation3], %s1117
          %s1119 = sand.u32 %s248, 1
          %s1120 = smul.addr %s1119, 8
          %s1121 = scalar_lea.vmem [#allocation2], %s1120
          %1122 = dma.done %s1118, 128
        $region72: #{tpu_custom_call.1} parent=67 // pred_fallthru
          _
      $region68: #{tpu_custom_call.1} parent=5 // pred_fallthru
        _
    $region6: #{tpu_custom_call.1} parent=1 // loop_footer
      %s23 = sadd.s32 1, %s19
    $region7: #{tpu_custom_call.1} parent=1 // loop_footer_branch
      %18 = sbr.rel target = $region3
    $region8: #{tpu_custom_call.1} parent=1 // loop_exit
      _
    %1123 = vsyncpa [#allocation3], 1
    %s1124 = scalar_lea.sflag [#allocation3], 1
    %1125 = vsyncpa %s1124, 1

</llo_original>
